<compile_context>
chip_gen: v6e
topology: v6e:2x2x1
jax: 0.10.0
libtpu: 0.0.40
codegen_flags: <defaults>
</compile_context>

<pallas_src>
import functools

import jax
import jax.numpy as jnp
from jax.experimental import pallas as pl
from jax.experimental.pallas import tpu as pltpu


def _round_up(x, m):
    return (x + m - 1) // m * m


def _residual_stack_kernel(x_ref, w1_ref, b1_ref, w2_ref, b2_ref, o_ref, *,
                           num_residual):
    """One grid step processes a (tile_n, F) slab of rows; weights stay resident."""
    x = x_ref[...].astype(jnp.float32)

    # num_residual is small & compile-time -> static unroll.
    for r in range(num_residual):
        y = jax.nn.silu(x)                                    # f32 on VPU/EUP
        y = jnp.dot(y.astype(w1_ref.dtype), w1_ref[r],        # bf16 MXU, f32 acc
                    preferred_element_type=jnp.float32)
        y = y + b1_ref[r]                                     # bias add in f32
        y = jax.nn.silu(y)
        y = jnp.dot(y.astype(w2_ref.dtype), w2_ref[r],
                    preferred_element_type=jnp.float32)
        y = y + b2_ref[r]
        x = x + y                                             # residual in f32

    o_ref[...] = x.astype(o_ref.dtype)


def prepare_residual_stack_params(w1, b1, w2, b2, *, matmul_dtype=jnp.bfloat16):
    """Transpose torch-layout [out,in] weights to [in,out], cast MXU operands to
    bf16, reshape biases for broadcasting. Call once / cache for fixed weights."""
    R, F, _ = w1.shape
    w1t = jnp.transpose(w1, (0, 2, 1)).astype(matmul_dtype)
    w2t = jnp.transpose(w2, (0, 2, 1)).astype(matmul_dtype)
    b1r = b1.reshape(R, 1, F).astype(jnp.float32)
    b2r = b2.reshape(R, 1, F).astype(jnp.float32)
    return w1t, b1r, w2t, b2r


def residual_stack_prepared(x, w1t, b1r, w2t, b2r, *, tile_n=256):
    N, F = x.shape
    R = w1t.shape[0]

    # --- choose row tile: fill the MXU M-dim, stay sublane-aligned (8), and
    # make sure the grid has >= 2 steps so v7x's second TensorCore gets work.
    tile = min(tile_n, _round_up(N, 8))
    tile = _round_up(tile, 8)
    if _round_up(N, tile) // tile < 2 and tile >= 16:
        tile = _round_up(tile // 2, 8)
    padded_n = _round_up(N, tile)

    x_in = jnp.pad(x, ((0, padded_n - N), (0, 0))) if padded_n != N else x
    grid = (padded_n // tile,)

    # Grid-invariant blocks: constant index_map -> fetched once; single-buffer.
    def full_spec(shape):
        return pl.BlockSpec(shape, lambda i: (0,) * len(shape),
                            pipeline_mode=pl.Buffered(1))

    # VMEM budget: single-buffered bf16 weights + f32 biases + double-buffered
    # f32 activation tiles, with headroom; capped well under v7x's 64 MiB.
    w_bytes = 2 * R * F * F * jnp.dtype(w1t.dtype).itemsize
    b_bytes = 2 * R * F * 4
    act_bytes = 2 * 2 * tile * F * 4
    est = w_bytes + b_bytes + act_bytes
    vmem_limit = int(min(max(2 * est + (8 << 20), 32 << 20), 48 << 20))

    kernel = functools.partial(_residual_stack_kernel, num_residual=R)

    out = pl.pallas_call(
        kernel,
        out_shape=jax.ShapeDtypeStruct((padded_n, F), x.dtype),
        grid_spec=pltpu.PrefetchScalarGridSpec(
            num_scalar_prefetch=0,
            grid=grid,
            in_specs=[
                pl.BlockSpec((tile, F), lambda i: (i, 0)),   # x tile (pipelined)
                full_spec((R, F, F)),                        # W1^T (bf16)
                full_spec((R, 1, F)),                        # b1   (f32)
                full_spec((R, F, F)),                        # W2^T (bf16)
                full_spec((R, 1, F)),                        # b2   (f32)
            ],
            out_specs=pl.BlockSpec((tile, F), lambda i: (i, 0)),
        ),
        compiler_params=pltpu.CompilerParams(
            dimension_semantics=("parallel",),
            vmem_limit_bytes=vmem_limit),
    )(x_in, w1t, b1r, w2t, b2r)

    return out[:N] if padded_n != N else out


def residual_stack(x, w1, b1, w2, b2, *, tile_n=256):
    """x: [N, F]; w1/w2: [R, F, F] (torch layout [out, in]); b1/b2: [R, F]."""
    params = prepare_residual_stack_params(w1, b1, w2, b2)
    return residual_stack_prepared(x, *params, tile_n=tile_n)


def residual_stack_ref(x, w1, b1, w2, b2):
    """Pure-JAX (f32) reference of the PyTorch ResidualStack forward."""
    xf = x.astype(jnp.float32)
    for r in range(w1.shape[0]):
        y = jax.nn.silu(xf)
        y = y @ w1[r].T + b1[r]
        y = jax.nn.silu(y)
        y = y @ w2[r].T + b2[r]
        xf = xf + y
    return xf.astype(x.dtype)


if __name__ == "__main__":
    # N not a multiple of the tile -> exercises the padding path; F lane-aligned.
    N, F, R = 50, 128, 3
    key = jax.random.PRNGKey(0)
    ks = jax.random.split(key, 6)

    x = jax.random.normal(ks[0], (N, F), dtype=jnp.float32)

    # Deterministic synthetic parameters (the PyTorch reset_parameters with
    # zero_init=True would zero linear2's weight, making the stack an identity;
    # small random values exercise the full compute path instead).
    scale = 0.1
    w1 = scale * jax.random.normal(ks[1], (R, F, F), dtype=jnp.float32)
    b1 = scale * jax.random.normal(ks[2], (R, F), dtype=jnp.float32)
    w2 = scale * jax.random.normal(ks[3], (R, F, F), dtype=jnp.float32)
    b2 = scale * jax.random.normal(ks[4], (R, F), dtype=jnp.float32)

    fn = jax.jit(functools.partial(residual_stack, tile_n=256))
    out = jax.block_until_ready(fn(x, w1, b1, w2, b2))

    ref = residual_stack_ref(x, w1, b1, w2, b2)
    assert out.shape == (N, F)
    # bf16 matmul operands with f32 accumulation -> looser tolerance than pure f32.
    assert jnp.allclose(out, ref, atol=5e-2, rtol=5e-2), "mismatch vs reference"

    print("KERNEL_OK")
</pallas_src>

<mosaic_0001>
module attributes {stable_mosaic.version = 11 : i64} {
  func.func @_residual_stack_kernel(%arg0: i32, %arg1: memref<32x128xf32, #tpu.memory_space<vmem>>, %arg2: memref<3x128x128xbf16, #tpu.memory_space<vmem>>, %arg3: memref<3x1x128xf32, #tpu.memory_space<vmem>>, %arg4: memref<3x128x128xbf16, #tpu.memory_space<vmem>>, %arg5: memref<3x1x128xf32, #tpu.memory_space<vmem>>, %arg6: memref<32x128xf32, #tpu.memory_space<vmem>>) attributes {dimension_semantics = [#tpu.dimension_semantics<parallel>], iteration_bounds = array<i64: 2>, scalar_prefetch = 0 : i64, scratch_operands = 0 : i64, tpu.core_type = #tpu.core_type<tc>, window_params = [{transform_indices = @transform_0, window_bounds = array<i64: 32, 128>}, {pipeline_mode = #tpu.pipeline_mode<synchronous>, transform_indices = @transform_1, window_bounds = array<i64: 3, 128, 128>}, {pipeline_mode = #tpu.pipeline_mode<synchronous>, transform_indices = @transform_2, window_bounds = array<i64: 3, 1, 128>}, {pipeline_mode = #tpu.pipeline_mode<synchronous>, transform_indices = @transform_3, window_bounds = array<i64: 3, 128, 128>}, {pipeline_mode = #tpu.pipeline_mode<synchronous>, transform_indices = @transform_4, window_bounds = array<i64: 3, 1, 128>}, {transform_indices = @transform_5, window_bounds = array<i64: 32, 128>}]} {
    %c0 = arith.constant 0 : index
    %c0_0 = arith.constant 0 : index
    %0 = vector.load %arg1[%c0, %c0_0] : memref<32x128xf32, #tpu.memory_space<vmem>>, vector<32x128xf32>
    %1 = arith.negf %0 : vector<32x128xf32>
    %2 = math.exp %1 : vector<32x128xf32>
    %cst = arith.constant 1.000000e+00 : f32
    %3 = vector.broadcast %cst : f32 to vector<32x128xf32>
    %4 = arith.addf %3, %2 : vector<32x128xf32>
    %5 = arith.divf %3, %4 : vector<32x128xf32>
    %6 = arith.mulf %0, %5 : vector<32x128xf32>
    %7 = arith.truncf %6 : vector<32x128xf32> to vector<32x128xbf16>
    %c0_1 = arith.constant 0 : index
    %c0_2 = arith.constant 0 : index
    %c0_3 = arith.constant 0 : index
    %8 = vector.load %arg2[%c0_1, %c0_2, %c0_3] : memref<3x128x128xbf16, #tpu.memory_space<vmem>>, vector<1x128x128xbf16>
    %9 = vector.shape_cast %8 : vector<1x128x128xbf16> to vector<128x128xbf16>
    %cst_4 = arith.constant dense<0.000000e+00> : vector<32x128xf32>
    %10 = tpu.matmul %7, %9, %cst_4 {dimension_numbers = #tpu.dot_dimension_numbers<[1], [0], [0], [1], [0, 0, 1, 1], [], []>} : vector<32x128xbf16>, vector<128x128xbf16>, vector<32x128xf32> -> vector<32x128xf32>
    %c0_5 = arith.constant 0 : index
    %c0_6 = arith.constant 0 : index
    %c0_7 = arith.constant 0 : index
    %11 = vector.load %arg3[%c0_5, %c0_6, %c0_7] : memref<3x1x128xf32, #tpu.memory_space<vmem>>, vector<1x1x128xf32>
    %12 = vector.shape_cast %11 : vector<1x1x128xf32> to vector<1x128xf32>
    %13 = vector.broadcast %12 : vector<1x128xf32> to vector<32x128xf32>
    %14 = arith.addf %10, %13 : vector<32x128xf32>
    %15 = arith.negf %14 : vector<32x128xf32>
    %16 = math.exp %15 : vector<32x128xf32>
    %cst_8 = arith.constant 1.000000e+00 : f32
    %17 = vector.broadcast %cst_8 : f32 to vector<32x128xf32>
    %18 = arith.addf %17, %16 : vector<32x128xf32>
    %19 = arith.divf %17, %18 : vector<32x128xf32>
    %20 = arith.mulf %14, %19 : vector<32x128xf32>
    %21 = arith.truncf %20 : vector<32x128xf32> to vector<32x128xbf16>
    %c0_9 = arith.constant 0 : index
    %c0_10 = arith.constant 0 : index
    %c0_11 = arith.constant 0 : index
    %22 = vector.load %arg4[%c0_9, %c0_10, %c0_11] : memref<3x128x128xbf16, #tpu.memory_space<vmem>>, vector<1x128x128xbf16>
    %23 = vector.shape_cast %22 : vector<1x128x128xbf16> to vector<128x128xbf16>
    %cst_12 = arith.constant dense<0.000000e+00> : vector<32x128xf32>
    %24 = tpu.matmul %21, %23, %cst_12 {dimension_numbers = #tpu.dot_dimension_numbers<[1], [0], [0], [1], [0, 0, 1, 1], [], []>} : vector<32x128xbf16>, vector<128x128xbf16>, vector<32x128xf32> -> vector<32x128xf32>
    %c0_13 = arith.constant 0 : index
    %c0_14 = arith.constant 0 : index
    %c0_15 = arith.constant 0 : index
    %25 = vector.load %arg5[%c0_13, %c0_14, %c0_15] : memref<3x1x128xf32, #tpu.memory_space<vmem>>, vector<1x1x128xf32>
    %26 = vector.shape_cast %25 : vector<1x1x128xf32> to vector<1x128xf32>
    %27 = vector.broadcast %26 : vector<1x128xf32> to vector<32x128xf32>
    %28 = arith.addf %24, %27 : vector<32x128xf32>
    %29 = arith.addf %0, %28 : vector<32x128xf32>
    %30 = arith.negf %29 : vector<32x128xf32>
    %31 = math.exp %30 : vector<32x128xf32>
    %cst_16 = arith.constant 1.000000e+00 : f32
    %32 = vector.broadcast %cst_16 : f32 to vector<32x128xf32>
    %33 = arith.addf %32, %31 : vector<32x128xf32>
    %34 = arith.divf %32, %33 : vector<32x128xf32>
    %35 = arith.mulf %29, %34 : vector<32x128xf32>
    %36 = arith.truncf %35 : vector<32x128xf32> to vector<32x128xbf16>
    %c1 = arith.constant 1 : index
    %c0_17 = arith.constant 0 : index
    %c0_18 = arith.constant 0 : index
    %37 = vector.load %arg2[%c1, %c0_17, %c0_18] : memref<3x128x128xbf16, #tpu.memory_space<vmem>>, vector<1x128x128xbf16>
    %38 = vector.shape_cast %37 : vector<1x128x128xbf16> to vector<128x128xbf16>
    %cst_19 = arith.constant dense<0.000000e+00> : vector<32x128xf32>
    %39 = tpu.matmul %36, %38, %cst_19 {dimension_numbers = #tpu.dot_dimension_numbers<[1], [0], [0], [1], [0, 0, 1, 1], [], []>} : vector<32x128xbf16>, vector<128x128xbf16>, vector<32x128xf32> -> vector<32x128xf32>
    %c1_20 = arith.constant 1 : index
    %c0_21 = arith.constant 0 : index
    %c0_22 = arith.constant 0 : index
    %40 = vector.load %arg3[%c1_20, %c0_21, %c0_22] : memref<3x1x128xf32, #tpu.memory_space<vmem>>, vector<1x1x128xf32>
    %41 = vector.shape_cast %40 : vector<1x1x128xf32> to vector<1x128xf32>
    %42 = vector.broadcast %41 : vector<1x128xf32> to vector<32x128xf32>
    %43 = arith.addf %39, %42 : vector<32x128xf32>
    %44 = arith.negf %43 : vector<32x128xf32>
    %45 = math.exp %44 : vector<32x128xf32>
    %cst_23 = arith.constant 1.000000e+00 : f32
    %46 = vector.broadcast %cst_23 : f32 to vector<32x128xf32>
    %47 = arith.addf %46, %45 : vector<32x128xf32>
    %48 = arith.divf %46, %47 : vector<32x128xf32>
    %49 = arith.mulf %43, %48 : vector<32x128xf32>
    %50 = arith.truncf %49 : vector<32x128xf32> to vector<32x128xbf16>
    %c1_24 = arith.constant 1 : index
    %c0_25 = arith.constant 0 : index
    %c0_26 = arith.constant 0 : index
    %51 = vector.load %arg4[%c1_24, %c0_25, %c0_26] : memref<3x128x128xbf16, #tpu.memory_space<vmem>>, vector<1x128x128xbf16>
    %52 = vector.shape_cast %51 : vector<1x128x128xbf16> to vector<128x128xbf16>
    %cst_27 = arith.constant dense<0.000000e+00> : vector<32x128xf32>
    %53 = tpu.matmul %50, %52, %cst_27 {dimension_numbers = #tpu.dot_dimension_numbers<[1], [0], [0], [1], [0, 0, 1, 1], [], []>} : vector<32x128xbf16>, vector<128x128xbf16>, vector<32x128xf32> -> vector<32x128xf32>
    %c1_28 = arith.constant 1 : index
    %c0_29 = arith.constant 0 : index
    %c0_30 = arith.constant 0 : index
    %54 = vector.load %arg5[%c1_28, %c0_29, %c0_30] : memref<3x1x128xf32, #tpu.memory_space<vmem>>, vector<1x1x128xf32>
    %55 = vector.shape_cast %54 : vector<1x1x128xf32> to vector<1x128xf32>
    %56 = vector.broadcast %55 : vector<1x128xf32> to vector<32x128xf32>
    %57 = arith.addf %53, %56 : vector<32x128xf32>
    %58 = arith.addf %29, %57 : vector<32x128xf32>
    %59 = arith.negf %58 : vector<32x128xf32>
    %60 = math.exp %59 : vector<32x128xf32>
    %cst_31 = arith.constant 1.000000e+00 : f32
    %61 = vector.broadcast %cst_31 : f32 to vector<32x128xf32>
    %62 = arith.addf %61, %60 : vector<32x128xf32>
    %63 = arith.divf %61, %62 : vector<32x128xf32>
    %64 = arith.mulf %58, %63 : vector<32x128xf32>
    %65 = arith.truncf %64 : vector<32x128xf32> to vector<32x128xbf16>
    %c2 = arith.constant 2 : index
    %c0_32 = arith.constant 0 : index
    %c0_33 = arith.constant 0 : index
    %66 = vector.load %arg2[%c2, %c0_32, %c0_33] : memref<3x128x128xbf16, #tpu.memory_space<vmem>>, vector<1x128x128xbf16>
    %67 = vector.shape_cast %66 : vector<1x128x128xbf16> to vector<128x128xbf16>
    %cst_34 = arith.constant dense<0.000000e+00> : vector<32x128xf32>
    %68 = tpu.matmul %65, %67, %cst_34 {dimension_numbers = #tpu.dot_dimension_numbers<[1], [0], [0], [1], [0, 0, 1, 1], [], []>} : vector<32x128xbf16>, vector<128x128xbf16>, vector<32x128xf32> -> vector<32x128xf32>
    %c2_35 = arith.constant 2 : index
    %c0_36 = arith.constant 0 : index
    %c0_37 = arith.constant 0 : index
    %69 = vector.load %arg3[%c2_35, %c0_36, %c0_37] : memref<3x1x128xf32, #tpu.memory_space<vmem>>, vector<1x1x128xf32>
    %70 = vector.shape_cast %69 : vector<1x1x128xf32> to vector<1x128xf32>
    %71 = vector.broadcast %70 : vector<1x128xf32> to vector<32x128xf32>
    %72 = arith.addf %68, %71 : vector<32x128xf32>
    %73 = arith.negf %72 : vector<32x128xf32>
    %74 = math.exp %73 : vector<32x128xf32>
    %cst_38 = arith.constant 1.000000e+00 : f32
    %75 = vector.broadcast %cst_38 : f32 to vector<32x128xf32>
    %76 = arith.addf %75, %74 : vector<32x128xf32>
    %77 = arith.divf %75, %76 : vector<32x128xf32>
    %78 = arith.mulf %72, %77 : vector<32x128xf32>
    %79 = arith.truncf %78 : vector<32x128xf32> to vector<32x128xbf16>
    %c2_39 = arith.constant 2 : index
    %c0_40 = arith.constant 0 : index
    %c0_41 = arith.constant 0 : index
    %80 = vector.load %arg4[%c2_39, %c0_40, %c0_41] : memref<3x128x128xbf16, #tpu.memory_space<vmem>>, vector<1x128x128xbf16>
    %81 = vector.shape_cast %80 : vector<1x128x128xbf16> to vector<128x128xbf16>
    %cst_42 = arith.constant dense<0.000000e+00> : vector<32x128xf32>
    %82 = tpu.matmul %79, %81, %cst_42 {dimension_numbers = #tpu.dot_dimension_numbers<[1], [0], [0], [1], [0, 0, 1, 1], [], []>} : vector<32x128xbf16>, vector<128x128xbf16>, vector<32x128xf32> -> vector<32x128xf32>
    %c2_43 = arith.constant 2 : index
    %c0_44 = arith.constant 0 : index
    %c0_45 = arith.constant 0 : index
    %83 = vector.load %arg5[%c2_43, %c0_44, %c0_45] : memref<3x1x128xf32, #tpu.memory_space<vmem>>, vector<1x1x128xf32>
    %84 = vector.shape_cast %83 : vector<1x1x128xf32> to vector<1x128xf32>
    %85 = vector.broadcast %84 : vector<1x128xf32> to vector<32x128xf32>
    %86 = arith.addf %82, %85 : vector<32x128xf32>
    %87 = arith.addf %58, %86 : vector<32x128xf32>
    %c0_46 = arith.constant 0 : index
    %c0_47 = arith.constant 0 : index
    %88 = vector.load %arg6[%c0_46, %c0_47] : memref<32x128xf32, #tpu.memory_space<vmem>>, vector<32x128xf32>
    tpu.vector_store %arg6[%c0_46, %c0_47], %87 {strides = array<i32>} : memref<32x128xf32, #tpu.memory_space<vmem>>, vector<32x128xf32>,
    return
  }
  func.func @transform_0(%arg0: i32) -> (i32, i32) {
    %c0_i32 = arith.constant 0 : i32
    %c0_i32_0 = arith.constant 0 : i32
    return %arg0, %c0_i32 : i32, i32
  }
  func.func @transform_1(%arg0: i32) -> (i32, i32, i32) {
    %c0_i32 = arith.constant 0 : i32
    %c0_i32_0 = arith.constant 0 : i32
    %c0_i32_1 = arith.constant 0 : i32
    %c0_i32_2 = arith.constant 0 : i32
    return %c0_i32, %c0_i32_0, %c0_i32_1 : i32, i32, i32
  }
  func.func @transform_2(%arg0: i32) -> (i32, i32, i32) {
    %c0_i32 = arith.constant 0 : i32
    %c0_i32_0 = arith.constant 0 : i32
    %c0_i32_1 = arith.constant 0 : i32
    %c0_i32_2 = arith.constant 0 : i32
    return %c0_i32, %c0_i32_0, %c0_i32_1 : i32, i32, i32
  }
  func.func @transform_3(%arg0: i32) -> (i32, i32, i32) {
    %c0_i32 = arith.constant 0 : i32
    %c0_i32_0 = arith.constant 0 : i32
    %c0_i32_1 = arith.constant 0 : i32
    %c0_i32_2 = arith.constant 0 : i32
    return %c0_i32, %c0_i32_0, %c0_i32_1 : i32, i32, i32
  }
  func.func @transform_4(%arg0: i32) -> (i32, i32, i32) {
    %c0_i32 = arith.constant 0 : i32
    %c0_i32_0 = arith.constant 0 : i32
    %c0_i32_1 = arith.constant 0 : i32
    %c0_i32_2 = arith.constant 0 : i32
    return %c0_i32, %c0_i32_0, %c0_i32_1 : i32, i32, i32
  }
  func.func @transform_5(%arg0: i32) -> (i32, i32) {
    %c0_i32 = arith.constant 0 : i32
    %c0_i32_0 = arith.constant 0 : i32
    return %arg0, %c0_i32 : i32, i32
  }
}

</mosaic_0001>

<llo_original>
// kernel: residual_stack.1
$region0: #{residual_stack.1}
  #allocation0 [shape = 'u32[]', space=smem, size = 0x4, offset = 0x4, fixed_abs, tag = 'smem constant byte address 0x4 - core index']
  #allocation1 [shape = 'u32[144,128]{1,0:T(1,128)}', space=vmem, size = 0x12000, scoped, tag = 'internal scratch']
  %s0 = inlined_call_operand.vmem [shape: f32[64,128], index: 0, kind: input, shape index: {}]
  %s1 = inlined_call_operand.vmem [shape: bf16[3,128,128], index: 1, kind: input, shape index: {}]
  %s2 = inlined_call_operand.vmem [shape: f32[3,1,128], index: 2, kind: input, shape index: {}]
  %s3 = inlined_call_operand.vmem [shape: bf16[3,128,128], index: 3, kind: input, shape index: {}]
  %s4 = inlined_call_operand.vmem [shape: f32[3,1,128], index: 4, kind: input, shape index: {}]
  %s5 = inlined_call_operand.vmem [shape: f32[64,128], index: 5, kind: output, shape index: {}]
  %s6 = sld [smem:[#allocation0]]
  $region53: #{residual_stack.1} parent=0
    _
  %s8 = ssub.s32 1, %s6
  %s9 = scalar_select 0, %s8, %s6
  loop: start=0, step=1, limit=4
  $region2: #{residual_stack.1} parent=0 // loop_pre_header
    _
  $region3: #{residual_stack.1} parent=0 // loop_header
    %s11 = sphi 0, %s15
    %p12 = scmp.ge.s32.totalorder %s11, 4
    %s21 = sphi 0, %s23
    %s24 = sphi 0, %s21
    %s25 = sphi 0, %s24
    %s41 = sphi 0, %s25
    %s45 = sphi 0, %s45
    %s47 = sphi 0, %s45
    %s48 = sphi 0, %s47
    %s62 = sphi 0, %s48
    %s66 = sphi 0, %s66
    %s68 = sphi 0, %s66
    %s69 = sphi 0, %s68
    %s83 = sphi 0, %s69
    %s87 = sphi 0, %s87
    %s89 = sphi 0, %s87
    %s90 = sphi 0, %s89
    %s104 = sphi 0, %s90
    %s108 = sphi 0, %s108
    %s110 = sphi 0, %s108
    %s111 = sphi 0, %s110
    %s125 = sphi 0, %s111
    %s131 = sphi 0, %s133
    %s134 = sphi 0, %s131
    %s135 = sphi 0, %s134
    %s151 = sphi 0, %s135
  $region4: #{residual_stack.1} parent=0 // loop_header_branch
    %14 = sbr.rel (%p12) target = $region8
  $region5: #{residual_stack.1} parent=0 // loop_body
    %s16 = ssub.s32 %s11, 1
    %s17 = ssub.s32 %s11, 2
    %s18 = sadd.s32 %s11, 1
    %s19 = ssub.s32 %s11, %s18
    %p20 = scmp.eq.s32.totalorder %s19, 0
    %s22 = sadd.s32 %s21, 1
    %s23 = scalar_select %p20, %s21, %s22
    %p26 = pneg %p20
    %p27 = scmp.eq.s32.totalorder %s11, 1
    %p28 = por %p26, %p27
    %p29 = scmp.ne.s32.totalorder %s21, %s24
    %p30 = scmp.eq.s32.totalorder %s11, 0
    %p31 = por %p29, %p30
    %p32 = scmp.ne.s32.totalorder %s21, %s24
    %p33 = scmp.eq.s32.totalorder %s16, 1
    %p34 = por %p32, %p33
    %p35 = scmp.ne.s32.totalorder %s24, %s25
    %p36 = scmp.eq.s32.totalorder %s16, 0
    %p37 = por %p35, %p36
    %p38 = scmp.ne.s32.totalorder %s24, %s25
    %p39 = scmp.eq.s32.totalorder %s17, 1
    %p40 = por %p38, %p39
    %p42 = scmp.ne.s32.totalorder %s25, %s41
    %p43 = scmp.eq.s32.totalorder %s17, 0
    %p44 = por %p42, %p43
    %s46 = sadd.s32 %s45, 1
    %p49 = scmp.eq.s32.totalorder %s11, 1
    %p50 = scmp.ne.s32.totalorder %s45, %s47
    %p51 = scmp.eq.s32.totalorder %s11, 0
    %p52 = por %p50, %p51
    %p53 = scmp.ne.s32.totalorder %s45, %s47
    %p54 = scmp.eq.s32.totalorder %s16, 1
    %p55 = por %p53, %p54
    %p56 = scmp.ne.s32.totalorder %s47, %s48
    %p57 = scmp.eq.s32.totalorder %s16, 0
    %p58 = por %p56, %p57
    %p59 = scmp.ne.s32.totalorder %s47, %s48
    %p60 = scmp.eq.s32.totalorder %s17, 1
    %p61 = por %p59, %p60
    %p63 = scmp.ne.s32.totalorder %s48, %s62
    %p64 = scmp.eq.s32.totalorder %s17, 0
    %p65 = por %p63, %p64
    %s67 = sadd.s32 %s66, 1
    %p70 = scmp.eq.s32.totalorder %s11, 1
    %p71 = scmp.ne.s32.totalorder %s66, %s68
    %p72 = scmp.eq.s32.totalorder %s11, 0
    %p73 = por %p71, %p72
    %p74 = scmp.ne.s32.totalorder %s66, %s68
    %p75 = scmp.eq.s32.totalorder %s16, 1
    %p76 = por %p74, %p75
    %p77 = scmp.ne.s32.totalorder %s68, %s69
    %p78 = scmp.eq.s32.totalorder %s16, 0
    %p79 = por %p77, %p78
    %p80 = scmp.ne.s32.totalorder %s68, %s69
    %p81 = scmp.eq.s32.totalorder %s17, 1
    %p82 = por %p80, %p81
    %p84 = scmp.ne.s32.totalorder %s69, %s83
    %p85 = scmp.eq.s32.totalorder %s17, 0
    %p86 = por %p84, %p85
    %s88 = sadd.s32 %s87, 1
    %p91 = scmp.eq.s32.totalorder %s11, 1
    %p92 = scmp.ne.s32.totalorder %s87, %s89
    %p93 = scmp.eq.s32.totalorder %s11, 0
    %p94 = por %p92, %p93
    %p95 = scmp.ne.s32.totalorder %s87, %s89
    %p96 = scmp.eq.s32.totalorder %s16, 1
    %p97 = por %p95, %p96
    %p98 = scmp.ne.s32.totalorder %s89, %s90
    %p99 = scmp.eq.s32.totalorder %s16, 0
    %p100 = por %p98, %p99
    %p101 = scmp.ne.s32.totalorder %s89, %s90
    %p102 = scmp.eq.s32.totalorder %s17, 1
    %p103 = por %p101, %p102
    %p105 = scmp.ne.s32.totalorder %s90, %s104
    %p106 = scmp.eq.s32.totalorder %s17, 0
    %p107 = por %p105, %p106
    %s109 = sadd.s32 %s108, 1
    %p112 = scmp.eq.s32.totalorder %s11, 1
    %p113 = scmp.ne.s32.totalorder %s108, %s110
    %p114 = scmp.eq.s32.totalorder %s11, 0
    %p115 = por %p113, %p114
    %p116 = scmp.ne.s32.totalorder %s108, %s110
    %p117 = scmp.eq.s32.totalorder %s16, 1
    %p118 = por %p116, %p117
    %p119 = scmp.ne.s32.totalorder %s110, %s111
    %p120 = scmp.eq.s32.totalorder %s16, 0
    %p121 = por %p119, %p120
    %p122 = scmp.ne.s32.totalorder %s110, %s111
    %p123 = scmp.eq.s32.totalorder %s17, 1
    %p124 = por %p122, %p123
    %p126 = scmp.ne.s32.totalorder %s111, %s125
    %p127 = scmp.eq.s32.totalorder %s17, 0
    %p128 = por %p126, %p127
    %s129 = ssub.s32 %s11, %s18
    %p130 = scmp.eq.s32.totalorder %s129, 0
    %s132 = sadd.s32 %s131, 1
    %s133 = scalar_select %p130, %s131, %s132
    %p136 = pneg %p130
    %p137 = scmp.eq.s32.totalorder %s11, 1
    %p138 = por %p136, %p137
    %p139 = scmp.ne.s32.totalorder %s131, %s134
    %p140 = scmp.eq.s32.totalorder %s11, 0
    %p141 = por %p139, %p140
    %p142 = scmp.ne.s32.totalorder %s131, %s134
    %p143 = scmp.eq.s32.totalorder %s16, 1
    %p144 = por %p142, %p143
    %p145 = scmp.ne.s32.totalorder %s134, %s135
    %p146 = scmp.eq.s32.totalorder %s16, 0
    %p147 = por %p145, %p146
    %p148 = scmp.ne.s32.totalorder %s134, %s135
    %p149 = scmp.eq.s32.totalorder %s17, 1
    %p150 = por %p148, %p149
    %p152 = scmp.ne.s32.totalorder %s135, %s151
    %p153 = scmp.eq.s32.totalorder %s17, 0
    %p154 = por %p152, %p153
    %p155 = scmp.le.s32.totalorder 1, %s11
    %p156 = scmp.lt.s32.totalorder %s11, 3
    %p157 = pnand %p155, %p156
    %p158 = pneg %p157
    // Predicated region
    $region9: #{residual_stack.1} parent=5 // pred_check
      _
    $region10: #{residual_stack.1} parent=5 // pred_check_branch
      %160 = sbr.rel (%p157) target = $region12
    $region11: #{residual_stack.1} parent=5 // pred_region
      %s161 = ssub.s32 %s11, 1
      // Predicated region
      $region13: #{residual_stack.1} parent=11 // pred_check
        %p162 = pneg %p58
      $region14: #{residual_stack.1} parent=11 // pred_check_branch
        %164 = sbr.rel (%p162) target = $region16
      $region15: #{residual_stack.1} parent=11 // pred_region
        _
      $region16: #{residual_stack.1} parent=11 // pred_fallthru
        _
      // Predicated region
      $region17: #{residual_stack.1} parent=11 // pred_check
        %p165 = pneg %p79
      $region18: #{residual_stack.1} parent=11 // pred_check_branch
        %167 = sbr.rel (%p165) target = $region20
      $region19: #{residual_stack.1} parent=11 // pred_region
        _
      $region20: #{residual_stack.1} parent=11 // pred_fallthru
        _
      // Predicated region
      $region21: #{residual_stack.1} parent=11 // pred_check
        %p168 = pneg %p100
      $region22: #{residual_stack.1} parent=11 // pred_check_branch
        %170 = sbr.rel (%p168) target = $region24
      $region23: #{residual_stack.1} parent=11 // pred_region
        _
      $region24: #{residual_stack.1} parent=11 // pred_fallthru
        _
      // Predicated region
      $region25: #{residual_stack.1} parent=11 // pred_check
        %p171 = pneg %p121
      $region26: #{residual_stack.1} parent=11 // pred_check_branch
        %173 = sbr.rel (%p171) target = $region28
      $region27: #{residual_stack.1} parent=11 // pred_region
        _
      $region28: #{residual_stack.1} parent=11 // pred_fallthru
        _
    $region12: #{residual_stack.1} parent=5 // pred_fallthru
      _
    %p174 = scmp.lt.s32.totalorder %s11, 2
    // Predicated region
    $region29: #{residual_stack.1} parent=5 // pred_check
      %p175 = pneg %p174
    $region30: #{residual_stack.1} parent=5 // pred_check_branch
      %177 = sbr.rel (%p175) target = $region32
    $region31: #{residual_stack.1} parent=5 // pred_region
      // Predicated region
      $region33: #{residual_stack.1} parent=31 // pred_check
        %p178 = pneg %p31
      $region34: #{residual_stack.1} parent=31 // pred_check_branch
        %180 = sbr.rel (%p178) target = $region36
      $region35: #{residual_stack.1} parent=31 // pred_region
        %s181 = smul.u32 4, %s11
        %p182 = scmp.lt.s32.totalorder %s181, 7
        %s183 = scalar_select %p182, %s181, 7
        %s184 = smul.addr %s183, 8
        %s185 = scalar_lea.vmem %s0, %s184
        %s186 = smul.u32 4, %s11
      $region36: #{residual_stack.1} parent=31 // pred_fallthru
        _
    $region32: #{residual_stack.1} parent=5 // pred_fallthru
      _
    %p187 = scmp.le.s32.totalorder 1, %s11
    %p188 = scmp.lt.s32.totalorder %s11, 3
    %p189 = pnand %p187, %p188
    %p190 = pneg %p189
    // Predicated region
    $region37: #{residual_stack.1} parent=5 // pred_check
      _
    $region38: #{residual_stack.1} parent=5 // pred_check_branch
      %192 = sbr.rel (%p189) target = $region40
    $region39: #{residual_stack.1} parent=5 // pred_region
      %s193 = ssub.s32 %s11, 1
      %s194 = smul.u32 4, %s16
      %p195 = scmp.lt.s32.totalorder %s194, 7
      %s196 = scalar_select %p195, %s194, 7
      %s197 = smul.addr %s196, 8
      %s198 = scalar_lea.vmem %s0, %s197
      %p199 = pneg %p37
      %p200 = pneg %p34
      %p201 = pneg %p58
      %p202 = pneg %p55
      %p203 = pneg %p79
      %p204 = pneg %p76
      %p205 = pneg %p100
      %p206 = pneg %p97
      %p207 = pneg %p121
      %p208 = pneg %p118
      %p209 = pneg %p147
      %p210 = pneg %p144
      %s211 = smul.u32 4, %s16
      %p212 = scmp.lt.s32.totalorder %s211, 7
      %s213 = scalar_select %p212, %s211, 7
      %s214 = smul.addr %s213, 8
      %s215 = scalar_lea.vmem %s5, %s214
      %s216 = smul.u32 4, %s16
      %p217 = scmp.lt.s32.totalorder %s216, 7
      %s218 = scalar_select %p217, %s216, 7
      %s219 = smul.addr %s218, 8
      %s220 = scalar_lea.vmem %s0, %s219
      %s221 = smul.u32 4, %s16
      %s222 = smul.u32 4, %s16
      %p223 = scmp.lt.s32.totalorder %s222, 7
      %s224 = scalar_select %p223, %s222, 7
      %s225 = smul.addr %s224, 8
      %s226 = scalar_lea.vmem %s5, %s225
      %s227 = smul.u32 4, %s16
      %v229 = vld [vmem:[%s220] sm:$0xff]
      %v230 = vld [vmem:[%s220 + $0x8] sm:$0xff]
      %v231 = vld [vmem:[%s220 + $0x10] sm:$0xff]
      %v232 = vld [vmem:[%s220 + $0x18] sm:$0xff]
      %v233 = vxor.u32 %v229, 2147483648
      %v234 = vxor.u32 %v230, 2147483648
      %v235 = vxor.u32 %v231, 2147483648
      %v236 = vxor.u32 %v232, 2147483648
      %v237 = vmul.f32 %v233, 1.442695
      %v238 = vpow.pop %v237
      %v239 = vmul.f32 %v234, 1.442695
      %v240 = vpow.pop %v239
      %v241 = vmul.f32 %v235, 1.442695
      %v242 = vpow.pop %v241
      %v243 = vmul.f32 %v236, 1.442695
      %v244 = vpow.pop %v243
      %v245 = vadd.f32 %v238, 1.0
      %v246 = vadd.f32 %v240, 1.0
      %v247 = vadd.f32 %v242, 1.0
      %v248 = vadd.f32 %v244, 1.0
      %v249 = vrcp.pop %v245
      %v250 = vmul.f32 1.0, %v249
      %v251 = vrcp.pop %v246
      %v252 = vmul.f32 1.0, %v251
      %v253 = vrcp.pop %v247
      %v254 = vmul.f32 1.0, %v253
      %v255 = vrcp.pop %v248
      %v256 = vmul.f32 1.0, %v255
      %v257 = vmul.f32 %v229, %v250
      %v258 = vmul.f32 %v230, %v252
      %v259 = vmul.f32 %v231, %v254
      %v260 = vmul.f32 %v232, %v256
      %v261 = vpack.c.bf16 %v258, %v257
      %v262 = vpack.c.bf16 %v260, %v259
      %v263 = vld [vmem:[%s1] sm:$0xf]
      %v264 = vld [vmem:[%s1 + $0x4] sm:$0xf]
      %v265 = vld [vmem:[%s1 + $0x8] sm:$0xf]
      %v266 = vld [vmem:[%s1 + $0xc] sm:$0xf]
      %v267 = vld [vmem:[%s1 + $0x10] sm:$0xf]
      %v268 = vld [vmem:[%s1 + $0x14] sm:$0xf]
      %v269 = vld [vmem:[%s1 + $0x18] sm:$0xf]
      %v270 = vld [vmem:[%s1 + $0x1c] sm:$0xf]
      %v271 = vld [vmem:[%s1 + $0x20] sm:$0xf]
      %v272 = vld [vmem:[%s1 + $0x24] sm:$0xf]
      %v273 = vld [vmem:[%s1 + $0x28] sm:$0xf]
      %v274 = vld [vmem:[%s1 + $0x2c] sm:$0xf]
      %v275 = vld [vmem:[%s1 + $0x30] sm:$0xf]
      %v276 = vld [vmem:[%s1 + $0x34] sm:$0xf]
      %v277 = vld [vmem:[%s1 + $0x38] sm:$0xf]
      %v278 = vld [vmem:[%s1 + $0x3c] sm:$0xf]
      %v279 = vld [vmem:[%s2] sm:$0x1]
      %v281 = vlaneseq
      %v282 = vshrl.u32 %v281, 7
      %v283 = vsub.s32 0, %v282
      %v284 = vrot.slane %v279, %v283
      %v302 = vunpack.c.l.b16 %v263
      %v303 = vunpack.c.l.b16 %v264
      %v304 = vunpack.c.l.b16 %v265
      %v305 = vunpack.c.l.b16 %v266
      %v306 = vunpack.c.l.b16 %v267
      %v307 = vunpack.c.l.b16 %v268
      %v308 = vunpack.c.l.b16 %v269
      %v309 = vunpack.c.l.b16 %v270
      %v310 = vunpack.c.l.b16 %v271
      %v311 = vunpack.c.l.b16 %v272
      %v312 = vunpack.c.l.b16 %v273
      %v313 = vunpack.c.l.b16 %v274
      %v314 = vunpack.c.l.b16 %v275
      %v315 = vunpack.c.l.b16 %v276
      %v316 = vunpack.c.l.b16 %v277
      %v317 = vunpack.c.l.b16 %v278
      %v318 = vpack.c.b16 %v303, %v302
      %v319 = vpack.c.b16 %v305, %v304
      %v320 = vpack.c.b16 %v307, %v306
      %v321 = vpack.c.b16 %v309, %v308
      %v322 = vpack.c.b16 %v311, %v310
      %v323 = vpack.c.b16 %v313, %v312
      %v324 = vpack.c.b16 %v315, %v314
      %v325 = vpack.c.b16 %v317, %v316
      %334 = vmatprep.subr.bf16.mxu0 0
      %335 = vmatpush1.bf16.msra.mxu0 %v325
      %336 = vmatprep.subr.bf16.mxu0 0
      %337 = vmatpush1.bf16.msra.mxu0 %v324
      %338 = vmatprep.subr.bf16.mxu0 0
      %339 = vmatpush1.bf16.msra.mxu0 %v323
      %340 = vmatprep.subr.bf16.mxu0 0
      %341 = vmatpush1.bf16.msra.mxu0 %v322
      %342 = vmatprep.subr.bf16.mxu0 0
      %343 = vmatpush1.bf16.msra.mxu0 %v321
      %344 = vmatprep.subr.bf16.mxu0 0
      %345 = vmatpush1.bf16.msra.mxu0 %v320
      %346 = vmatprep.subr.bf16.mxu0 0
      %347 = vmatpush1.bf16.msra.mxu0 %v319
      %348 = vmatprep.subr.bf16.mxu0 0
      %349 = vmatpush1.bf16.msra.mxu0 %v318
      %350 = vmatprep.subr.bf16.mxu0 0
      %351 = vmatpush2.bf16.msra.mxu0 0
      %352 = vmatprep.subr.bf16.mxu0 0
      %353 = vmatpush2.bf16.msra.mxu0 0
      %354 = vmatprep.subr.bf16.mxu0 0
      %355 = vmatpush2.bf16.msra.mxu0 0
      %356 = vmatprep.subr.bf16.mxu0 0
      %357 = vmatpush2.bf16.msra.mxu0 0
      %358 = vmatprep.subr.bf16.mxu0 0
      %359 = vmatpush2.bf16.msra.mxu0 0
      %360 = vmatprep.subr.bf16.mxu0 0
      %361 = vmatpush2.bf16.msra.mxu0 0
      %362 = vmatprep.subr.bf16.mxu0 0
      %363 = vmatpush2.bf16.msra.mxu0 0
      %364 = vmatprep.subr.bf16.mxu0 0
      %365 = vmatpush2.bf16.msra.mxu0 0
      %366 = vmatprep.mubr.bf16.mxu0 0
      %367 = vmatmul.mubr.bf16.gmra.mxu0 %v261
      %v368 = vpop.f32.mrf.mxu0
      %v369 = vadd.f32 %v284, %v368
      %v370 = vpop.f32.mrf.mxu0
      %v371 = vpop.f32.mrf.mxu0
      %v372 = vadd.f32 %v284, %v371
      %v373 = vpop.f32.mrf.mxu0
      %374 = vmatprep.mubr.bf16.mxu0 0
      %375 = vmatmul.mubr.bf16.gmra.mxu0 %v262
      %v376 = vpop.f32.mrf.mxu0
      %v377 = vadd.f32 %v284, %v376
      %v378 = vpop.f32.mrf.mxu0
      %v379 = vpop.f32.mrf.mxu0
      %v380 = vadd.f32 %v284, %v379
      %v381 = vpop.f32.mrf.mxu0
      %382 = vdwg.mxu0
      %v383 = vxor.u32 %v369, 2147483648
      %v384 = vxor.u32 %v372, 2147483648
      %v385 = vxor.u32 %v377, 2147483648
      %v386 = vxor.u32 %v380, 2147483648
      %v387 = vmul.f32 %v383, 1.442695
      %v388 = vpow.pop %v387
      %v389 = vmul.f32 %v384, 1.442695
      %v390 = vpow.pop %v389
      %v391 = vmul.f32 %v385, 1.442695
      %v392 = vpow.pop %v391
      %v393 = vmul.f32 %v386, 1.442695
      %v394 = vpow.pop %v393
      %v395 = vadd.f32 %v388, 1.0
      %v396 = vadd.f32 %v390, 1.0
      %v397 = vadd.f32 %v392, 1.0
      %v398 = vadd.f32 %v394, 1.0
      %v399 = vrcp.pop %v395
      %v400 = vmul.f32 1.0, %v399
      %v401 = vrcp.pop %v396
      %v402 = vmul.f32 1.0, %v401
      %v403 = vrcp.pop %v397
      %v404 = vmul.f32 1.0, %v403
      %v405 = vrcp.pop %v398
      %v406 = vmul.f32 1.0, %v405
      %v407 = vmul.f32 %v369, %v400
      %v408 = vmul.f32 %v372, %v402
      %v409 = vmul.f32 %v377, %v404
      %v410 = vmul.f32 %v380, %v406
      %v411 = vpack.c.bf16 %v408, %v407
      %v412 = vpack.c.bf16 %v410, %v409
      %v413 = vld [vmem:[%s3] sm:$0xf]
      %v414 = vld [vmem:[%s3 + $0x4] sm:$0xf]
      %v415 = vld [vmem:[%s3 + $0x8] sm:$0xf]
      %v416 = vld [vmem:[%s3 + $0xc] sm:$0xf]
      %v417 = vld [vmem:[%s3 + $0x10] sm:$0xf]
      %v418 = vld [vmem:[%s3 + $0x14] sm:$0xf]
      %v419 = vld [vmem:[%s3 + $0x18] sm:$0xf]
      %v420 = vld [vmem:[%s3 + $0x1c] sm:$0xf]
      %v421 = vld [vmem:[%s3 + $0x20] sm:$0xf]
      %v422 = vld [vmem:[%s3 + $0x24] sm:$0xf]
      %v423 = vld [vmem:[%s3 + $0x28] sm:$0xf]
      %v424 = vld [vmem:[%s3 + $0x2c] sm:$0xf]
      %v425 = vld [vmem:[%s3 + $0x30] sm:$0xf]
      %v426 = vld [vmem:[%s3 + $0x34] sm:$0xf]
      %v427 = vld [vmem:[%s3 + $0x38] sm:$0xf]
      %v428 = vld [vmem:[%s3 + $0x3c] sm:$0xf]
      %v429 = vld [vmem:[%s4] sm:$0x1]
      %v431 = vlaneseq
      %v432 = vshrl.u32 %v431, 7
      %v433 = vsub.s32 0, %v432
      %v434 = vrot.slane %v429, %v433
      %v452 = vunpack.c.l.b16 %v413
      %v453 = vunpack.c.l.b16 %v414
      %v454 = vunpack.c.l.b16 %v415
      %v455 = vunpack.c.l.b16 %v416
      %v456 = vunpack.c.l.b16 %v417
      %v457 = vunpack.c.l.b16 %v418
      %v458 = vunpack.c.l.b16 %v419
      %v459 = vunpack.c.l.b16 %v420
      %v460 = vunpack.c.l.b16 %v421
      %v461 = vunpack.c.l.b16 %v422
      %v462 = vunpack.c.l.b16 %v423
      %v463 = vunpack.c.l.b16 %v424
      %v464 = vunpack.c.l.b16 %v425
      %v465 = vunpack.c.l.b16 %v426
      %v466 = vunpack.c.l.b16 %v427
      %v467 = vunpack.c.l.b16 %v428
      %v468 = vpack.c.b16 %v453, %v452
      %v469 = vpack.c.b16 %v455, %v454
      %v470 = vpack.c.b16 %v457, %v456
      %v471 = vpack.c.b16 %v459, %v458
      %v472 = vpack.c.b16 %v461, %v460
      %v473 = vpack.c.b16 %v463, %v462
      %v474 = vpack.c.b16 %v465, %v464
      %v475 = vpack.c.b16 %v467, %v466
      %484 = vmatprep.subr.bf16.mxu0 0
      %485 = vmatpush1.bf16.msra.mxu0 %v475
      %486 = vmatprep.subr.bf16.mxu0 0
      %487 = vmatpush1.bf16.msra.mxu0 %v474
      %488 = vmatprep.subr.bf16.mxu0 0
      %489 = vmatpush1.bf16.msra.mxu0 %v473
      %490 = vmatprep.subr.bf16.mxu0 0
      %491 = vmatpush1.bf16.msra.mxu0 %v472
      %492 = vmatprep.subr.bf16.mxu0 0
      %493 = vmatpush1.bf16.msra.mxu0 %v471
      %494 = vmatprep.subr.bf16.mxu0 0
      %495 = vmatpush1.bf16.msra.mxu0 %v470
      %496 = vmatprep.subr.bf16.mxu0 0
      %497 = vmatpush1.bf16.msra.mxu0 %v469
      %498 = vmatprep.subr.bf16.mxu0 0
      %499 = vmatpush1.bf16.msra.mxu0 %v468
      %500 = vmatprep.subr.bf16.mxu0 0
      %501 = vmatpush2.bf16.msra.mxu0 0
      %502 = vmatprep.subr.bf16.mxu0 0
      %503 = vmatpush2.bf16.msra.mxu0 0
      %504 = vmatprep.subr.bf16.mxu0 0
      %505 = vmatpush2.bf16.msra.mxu0 0
      %506 = vmatprep.subr.bf16.mxu0 0
      %507 = vmatpush2.bf16.msra.mxu0 0
      %508 = vmatprep.subr.bf16.mxu0 0
      %509 = vmatpush2.bf16.msra.mxu0 0
      %510 = vmatprep.subr.bf16.mxu0 0
      %511 = vmatpush2.bf16.msra.mxu0 0
      %512 = vmatprep.subr.bf16.mxu0 0
      %513 = vmatpush2.bf16.msra.mxu0 0
      %514 = vmatprep.subr.bf16.mxu0 0
      %515 = vmatpush2.bf16.msra.mxu0 0
      %516 = vmatprep.mubr.bf16.mxu0 0
      %517 = vmatmul.mubr.bf16.gmra.mxu0 %v411
      %v518 = vpop.f32.mrf.mxu0
      %v519 = vadd.f32 %v434, %v518
      %v520 = vpop.f32.mrf.mxu0
      %v521 = vpop.f32.mrf.mxu0
      %v522 = vadd.f32 %v434, %v521
      %v523 = vpop.f32.mrf.mxu0
      %524 = vmatprep.mubr.bf16.mxu0 0
      %525 = vmatmul.mubr.bf16.gmra.mxu0 %v412
      %v526 = vpop.f32.mrf.mxu0
      %v527 = vadd.f32 %v434, %v526
      %v528 = vpop.f32.mrf.mxu0
      %v529 = vpop.f32.mrf.mxu0
      %v530 = vadd.f32 %v434, %v529
      %v531 = vpop.f32.mrf.mxu0
      %532 = vdwg.mxu0
      %v533 = vadd.f32 %v229, %v519
      %v534 = vadd.f32 %v230, %v522
      %v535 = vadd.f32 %v231, %v527
      %v536 = vadd.f32 %v232, %v530
      %v537 = vxor.u32 %v533, 2147483648
      %v538 = vxor.u32 %v534, 2147483648
      %v539 = vxor.u32 %v535, 2147483648
      %v540 = vxor.u32 %v536, 2147483648
      %v541 = vmul.f32 %v537, 1.442695
      %v542 = vpow.pop %v541
      %v543 = vmul.f32 %v538, 1.442695
      %v544 = vpow.pop %v543
      %v545 = vmul.f32 %v539, 1.442695
      %v546 = vpow.pop %v545
      %v547 = vmul.f32 %v540, 1.442695
      %v548 = vpow.pop %v547
      %v549 = vadd.f32 %v542, 1.0
      %v550 = vadd.f32 %v544, 1.0
      %v551 = vadd.f32 %v546, 1.0
      %v552 = vadd.f32 %v548, 1.0
      %v553 = vrcp.pop %v549
      %v554 = vmul.f32 1.0, %v553
      %v555 = vrcp.pop %v550
      %v556 = vmul.f32 1.0, %v555
      %v557 = vrcp.pop %v551
      %v558 = vmul.f32 1.0, %v557
      %v559 = vrcp.pop %v552
      %v560 = vmul.f32 1.0, %v559
      %v561 = vmul.f32 %v533, %v554
      %v562 = vmul.f32 %v534, %v556
      %v563 = vmul.f32 %v535, %v558
      %v564 = vmul.f32 %v536, %v560
      %v565 = vpack.c.bf16 %v562, %v561
      %v566 = vpack.c.bf16 %v564, %v563
      %s567 = scalar_lea.vmem %s1, 64
      %v568 = vld [vmem:[%s567] sm:$0xf]
      %v569 = vld [vmem:[%s567 + $0x4] sm:$0xf]
      %v570 = vld [vmem:[%s567 + $0x8] sm:$0xf]
      %v571 = vld [vmem:[%s567 + $0xc] sm:$0xf]
      %v572 = vld [vmem:[%s567 + $0x10] sm:$0xf]
      %v573 = vld [vmem:[%s567 + $0x14] sm:$0xf]
      %v574 = vld [vmem:[%s567 + $0x18] sm:$0xf]
      %v575 = vld [vmem:[%s567 + $0x1c] sm:$0xf]
      %v576 = vld [vmem:[%s567 + $0x20] sm:$0xf]
      %v577 = vld [vmem:[%s567 + $0x24] sm:$0xf]
      %v578 = vld [vmem:[%s567 + $0x28] sm:$0xf]
      %v579 = vld [vmem:[%s567 + $0x2c] sm:$0xf]
      %v580 = vld [vmem:[%s567 + $0x30] sm:$0xf]
      %v581 = vld [vmem:[%s567 + $0x34] sm:$0xf]
      %v582 = vld [vmem:[%s567 + $0x38] sm:$0xf]
      %v583 = vld [vmem:[%s567 + $0x3c] sm:$0xf]
      %s584 = scalar_lea.vmem %s2, 1
      %v585 = vld [vmem:[%s584] sm:$0x1]
      %v587 = vlaneseq
      %v588 = vshrl.u32 %v587, 7
      %v589 = vsub.s32 0, %v588
      %v590 = vrot.slane %v585, %v589
      %v608 = vunpack.c.l.b16 %v568
      %v609 = vunpack.c.l.b16 %v569
      %v610 = vunpack.c.l.b16 %v570
      %v611 = vunpack.c.l.b16 %v571
      %v612 = vunpack.c.l.b16 %v572
      %v613 = vunpack.c.l.b16 %v573
      %v614 = vunpack.c.l.b16 %v574
      %v615 = vunpack.c.l.b16 %v575
      %v616 = vunpack.c.l.b16 %v576
      %v617 = vunpack.c.l.b16 %v577
      %v618 = vunpack.c.l.b16 %v578
      %v619 = vunpack.c.l.b16 %v579
      %v620 = vunpack.c.l.b16 %v580
      %v621 = vunpack.c.l.b16 %v581
      %v622 = vunpack.c.l.b16 %v582
      %v623 = vunpack.c.l.b16 %v583
      %v624 = vpack.c.b16 %v609, %v608
      %v625 = vpack.c.b16 %v611, %v610
      %v626 = vpack.c.b16 %v613, %v612
      %v627 = vpack.c.b16 %v615, %v614
      %v628 = vpack.c.b16 %v617, %v616
      %v629 = vpack.c.b16 %v619, %v618
      %v630 = vpack.c.b16 %v621, %v620
      %v631 = vpack.c.b16 %v623, %v622
      %640 = vmatprep.subr.bf16.mxu0 0
      %641 = vmatpush1.bf16.msra.mxu0 %v631
      %642 = vmatprep.subr.bf16.mxu0 0
      %643 = vmatpush1.bf16.msra.mxu0 %v630
      %644 = vmatprep.subr.bf16.mxu0 0
      %645 = vmatpush1.bf16.msra.mxu0 %v629
      %646 = vmatprep.subr.bf16.mxu0 0
      %647 = vmatpush1.bf16.msra.mxu0 %v628
      %648 = vmatprep.subr.bf16.mxu0 0
      %649 = vmatpush1.bf16.msra.mxu0 %v627
      %650 = vmatprep.subr.bf16.mxu0 0
      %651 = vmatpush1.bf16.msra.mxu0 %v626
      %652 = vmatprep.subr.bf16.mxu0 0
      %653 = vmatpush1.bf16.msra.mxu0 %v625
      %654 = vmatprep.subr.bf16.mxu0 0
      %655 = vmatpush1.bf16.msra.mxu0 %v624
      %656 = vmatprep.subr.bf16.mxu0 0
      %657 = vmatpush2.bf16.msra.mxu0 0
      %658 = vmatprep.subr.bf16.mxu0 0
      %659 = vmatpush2.bf16.msra.mxu0 0
      %660 = vmatprep.subr.bf16.mxu0 0
      %661 = vmatpush2.bf16.msra.mxu0 0
      %662 = vmatprep.subr.bf16.mxu0 0
      %663 = vmatpush2.bf16.msra.mxu0 0
      %664 = vmatprep.subr.bf16.mxu0 0
      %665 = vmatpush2.bf16.msra.mxu0 0
      %666 = vmatprep.subr.bf16.mxu0 0
      %667 = vmatpush2.bf16.msra.mxu0 0
      %668 = vmatprep.subr.bf16.mxu0 0
      %669 = vmatpush2.bf16.msra.mxu0 0
      %670 = vmatprep.subr.bf16.mxu0 0
      %671 = vmatpush2.bf16.msra.mxu0 0
      %672 = vmatprep.mubr.bf16.mxu0 0
      %673 = vmatmul.mubr.bf16.gmra.mxu0 %v565
      %v674 = vpop.f32.mrf.mxu0
      %v675 = vadd.f32 %v590, %v674
      %v676 = vpop.f32.mrf.mxu0
      %v677 = vpop.f32.mrf.mxu0
      %v678 = vadd.f32 %v590, %v677
      %v679 = vpop.f32.mrf.mxu0
      %680 = vmatprep.mubr.bf16.mxu0 0
      %681 = vmatmul.mubr.bf16.gmra.mxu0 %v566
      %v682 = vpop.f32.mrf.mxu0
      %v683 = vadd.f32 %v590, %v682
      %v684 = vpop.f32.mrf.mxu0
      %v685 = vpop.f32.mrf.mxu0
      %v686 = vadd.f32 %v590, %v685
      %v687 = vpop.f32.mrf.mxu0
      %688 = vdwg.mxu0
      %v689 = vxor.u32 %v675, 2147483648
      %v690 = vxor.u32 %v678, 2147483648
      %v691 = vxor.u32 %v683, 2147483648
      %v692 = vxor.u32 %v686, 2147483648
      %v693 = vmul.f32 %v689, 1.442695
      %v694 = vpow.pop %v693
      %v695 = vmul.f32 %v690, 1.442695
      %v696 = vpow.pop %v695
      %v697 = vmul.f32 %v691, 1.442695
      %v698 = vpow.pop %v697
      %v699 = vmul.f32 %v692, 1.442695
      %v700 = vpow.pop %v699
      %v701 = vadd.f32 %v694, 1.0
      %v702 = vadd.f32 %v696, 1.0
      %v703 = vadd.f32 %v698, 1.0
      %v704 = vadd.f32 %v700, 1.0
      %v705 = vrcp.pop %v701
      %v706 = vmul.f32 1.0, %v705
      %v707 = vrcp.pop %v702
      %v708 = vmul.f32 1.0, %v707
      %v709 = vrcp.pop %v703
      %v710 = vmul.f32 1.0, %v709
      %v711 = vrcp.pop %v704
      %v712 = vmul.f32 1.0, %v711
      %v713 = vmul.f32 %v675, %v706
      %v714 = vmul.f32 %v678, %v708
      %v715 = vmul.f32 %v683, %v710
      %v716 = vmul.f32 %v686, %v712
      %v717 = vpack.c.bf16 %v714, %v713
      %v718 = vpack.c.bf16 %v716, %v715
      %s719 = scalar_lea.vmem %s3, 64
      %v720 = vld [vmem:[%s719] sm:$0xf]
      %v721 = vld [vmem:[%s719 + $0x4] sm:$0xf]
      %v722 = vld [vmem:[%s719 + $0x8] sm:$0xf]
      %v723 = vld [vmem:[%s719 + $0xc] sm:$0xf]
      %v724 = vld [vmem:[%s719 + $0x10] sm:$0xf]
      %v725 = vld [vmem:[%s719 + $0x14] sm:$0xf]
      %v726 = vld [vmem:[%s719 + $0x18] sm:$0xf]
      %v727 = vld [vmem:[%s719 + $0x1c] sm:$0xf]
      %v728 = vld [vmem:[%s719 + $0x20] sm:$0xf]
      %v729 = vld [vmem:[%s719 + $0x24] sm:$0xf]
      %v730 = vld [vmem:[%s719 + $0x28] sm:$0xf]
      %v731 = vld [vmem:[%s719 + $0x2c] sm:$0xf]
      %v732 = vld [vmem:[%s719 + $0x30] sm:$0xf]
      %v733 = vld [vmem:[%s719 + $0x34] sm:$0xf]
      %v734 = vld [vmem:[%s719 + $0x38] sm:$0xf]
      %v735 = vld [vmem:[%s719 + $0x3c] sm:$0xf]
      %s736 = scalar_lea.vmem %s4, 1
      %v737 = vld [vmem:[%s736] sm:$0x1]
      %v739 = vlaneseq
      %v740 = vshrl.u32 %v739, 7
      %v741 = vsub.s32 0, %v740
      %v742 = vrot.slane %v737, %v741
      %v760 = vunpack.c.l.b16 %v720
      %v761 = vunpack.c.l.b16 %v721
      %v762 = vunpack.c.l.b16 %v722
      %v763 = vunpack.c.l.b16 %v723
      %v764 = vunpack.c.l.b16 %v724
      %v765 = vunpack.c.l.b16 %v725
      %v766 = vunpack.c.l.b16 %v726
      %v767 = vunpack.c.l.b16 %v727
      %v768 = vunpack.c.l.b16 %v728
      %v769 = vunpack.c.l.b16 %v729
      %v770 = vunpack.c.l.b16 %v730
      %v771 = vunpack.c.l.b16 %v731
      %v772 = vunpack.c.l.b16 %v732
      %v773 = vunpack.c.l.b16 %v733
      %v774 = vunpack.c.l.b16 %v734
      %v775 = vunpack.c.l.b16 %v735
      %v776 = vpack.c.b16 %v761, %v760
      %v777 = vpack.c.b16 %v763, %v762
      %v778 = vpack.c.b16 %v765, %v764
      %v779 = vpack.c.b16 %v767, %v766
      %v780 = vpack.c.b16 %v769, %v768
      %v781 = vpack.c.b16 %v771, %v770
      %v782 = vpack.c.b16 %v773, %v772
      %v783 = vpack.c.b16 %v775, %v774
      %792 = vmatprep.subr.bf16.mxu0 0
      %793 = vmatpush1.bf16.msra.mxu0 %v783
      %794 = vmatprep.subr.bf16.mxu0 0
      %795 = vmatpush1.bf16.msra.mxu0 %v782
      %796 = vmatprep.subr.bf16.mxu0 0
      %797 = vmatpush1.bf16.msra.mxu0 %v781
      %798 = vmatprep.subr.bf16.mxu0 0
      %799 = vmatpush1.bf16.msra.mxu0 %v780
      %800 = vmatprep.subr.bf16.mxu0 0
      %801 = vmatpush1.bf16.msra.mxu0 %v779
      %802 = vmatprep.subr.bf16.mxu0 0
      %803 = vmatpush1.bf16.msra.mxu0 %v778
      %804 = vmatprep.subr.bf16.mxu0 0
      %805 = vmatpush1.bf16.msra.mxu0 %v777
      %806 = vmatprep.subr.bf16.mxu0 0
      %807 = vmatpush1.bf16.msra.mxu0 %v776
      %808 = vmatprep.subr.bf16.mxu0 0
      %809 = vmatpush2.bf16.msra.mxu0 0
      %810 = vmatprep.subr.bf16.mxu0 0
      %811 = vmatpush2.bf16.msra.mxu0 0
      %812 = vmatprep.subr.bf16.mxu0 0
      %813 = vmatpush2.bf16.msra.mxu0 0
      %814 = vmatprep.subr.bf16.mxu0 0
      %815 = vmatpush2.bf16.msra.mxu0 0
      %816 = vmatprep.subr.bf16.mxu0 0
      %817 = vmatpush2.bf16.msra.mxu0 0
      %818 = vmatprep.subr.bf16.mxu0 0
      %819 = vmatpush2.bf16.msra.mxu0 0
      %820 = vmatprep.subr.bf16.mxu0 0
      %821 = vmatpush2.bf16.msra.mxu0 0
      %822 = vmatprep.subr.bf16.mxu0 0
      %823 = vmatpush2.bf16.msra.mxu0 0
      %824 = vmatprep.mubr.bf16.mxu0 0
      %825 = vmatmul.mubr.bf16.gmra.mxu0 %v717
      %v826 = vpop.f32.mrf.mxu0
      %v827 = vadd.f32 %v742, %v826
      %v828 = vpop.f32.mrf.mxu0
      %v829 = vpop.f32.mrf.mxu0
      %v830 = vadd.f32 %v742, %v829
      %v831 = vpop.f32.mrf.mxu0
      %832 = vmatprep.mubr.bf16.mxu0 0
      %833 = vmatmul.mubr.bf16.gmra.mxu0 %v718
      %v834 = vpop.f32.mrf.mxu0
      %v835 = vadd.f32 %v742, %v834
      %v836 = vpop.f32.mrf.mxu0
      %v837 = vpop.f32.mrf.mxu0
      %v838 = vadd.f32 %v742, %v837
      %v839 = vpop.f32.mrf.mxu0
      %840 = vdwg.mxu0
      %v841 = vadd.f32 %v533, %v827
      %v842 = vadd.f32 %v534, %v830
      %v843 = vadd.f32 %v535, %v835
      %v844 = vadd.f32 %v536, %v838
      %v845 = vxor.u32 %v841, 2147483648
      %v846 = vxor.u32 %v842, 2147483648
      %v847 = vxor.u32 %v843, 2147483648
      %v848 = vxor.u32 %v844, 2147483648
      %v849 = vmul.f32 %v845, 1.442695
      %v850 = vpow.pop %v849
      %v851 = vmul.f32 %v846, 1.442695
      %v852 = vpow.pop %v851
      %v853 = vmul.f32 %v847, 1.442695
      %v854 = vpow.pop %v853
      %v855 = vmul.f32 %v848, 1.442695
      %v856 = vpow.pop %v855
      %v857 = vadd.f32 %v850, 1.0
      %v858 = vadd.f32 %v852, 1.0
      %v859 = vadd.f32 %v854, 1.0
      %v860 = vadd.f32 %v856, 1.0
      %v861 = vrcp.pop %v857
      %v862 = vmul.f32 1.0, %v861
      %v863 = vrcp.pop %v858
      %v864 = vmul.f32 1.0, %v863
      %v865 = vrcp.pop %v859
      %v866 = vmul.f32 1.0, %v865
      %v867 = vrcp.pop %v860
      %v868 = vmul.f32 1.0, %v867
      %v869 = vmul.f32 %v841, %v862
      %v870 = vmul.f32 %v842, %v864
      %v871 = vmul.f32 %v843, %v866
      %v872 = vmul.f32 %v844, %v868
      %v873 = vpack.c.bf16 %v870, %v869
      %v874 = vpack.c.bf16 %v872, %v871
      %s875 = scalar_lea.vmem %s1, 128
      %v876 = vld [vmem:[%s875] sm:$0xf]
      %v877 = vld [vmem:[%s875 + $0x4] sm:$0xf]
      %v878 = vld [vmem:[%s875 + $0x8] sm:$0xf]
      %v879 = vld [vmem:[%s875 + $0xc] sm:$0xf]
      %v880 = vld [vmem:[%s875 + $0x10] sm:$0xf]
      %v881 = vld [vmem:[%s875 + $0x14] sm:$0xf]
      %v882 = vld [vmem:[%s875 + $0x18] sm:$0xf]
      %v883 = vld [vmem:[%s875 + $0x1c] sm:$0xf]
      %v884 = vld [vmem:[%s875 + $0x20] sm:$0xf]
      %v885 = vld [vmem:[%s875 + $0x24] sm:$0xf]
      %v886 = vld [vmem:[%s875 + $0x28] sm:$0xf]
      %v887 = vld [vmem:[%s875 + $0x2c] sm:$0xf]
      %v888 = vld [vmem:[%s875 + $0x30] sm:$0xf]
      %v889 = vld [vmem:[%s875 + $0x34] sm:$0xf]
      %v890 = vld [vmem:[%s875 + $0x38] sm:$0xf]
      %v891 = vld [vmem:[%s875 + $0x3c] sm:$0xf]
      %s892 = scalar_lea.vmem %s2, 2
      %v893 = vld [vmem:[%s892] sm:$0x1]
      %v895 = vlaneseq
      %v896 = vshrl.u32 %v895, 7
      %v897 = vsub.s32 0, %v896
      %v898 = vrot.slane %v893, %v897
      %v916 = vunpack.c.l.b16 %v876
      %v917 = vunpack.c.l.b16 %v877
      %v918 = vunpack.c.l.b16 %v878
      %v919 = vunpack.c.l.b16 %v879
      %v920 = vunpack.c.l.b16 %v880
      %v921 = vunpack.c.l.b16 %v881
      %v922 = vunpack.c.l.b16 %v882
      %v923 = vunpack.c.l.b16 %v883
      %v924 = vunpack.c.l.b16 %v884
      %v925 = vunpack.c.l.b16 %v885
      %v926 = vunpack.c.l.b16 %v886
      %v927 = vunpack.c.l.b16 %v887
      %v928 = vunpack.c.l.b16 %v888
      %v929 = vunpack.c.l.b16 %v889
      %v930 = vunpack.c.l.b16 %v890
      %v931 = vunpack.c.l.b16 %v891
      %v932 = vpack.c.b16 %v917, %v916
      %v933 = vpack.c.b16 %v919, %v918
      %v934 = vpack.c.b16 %v921, %v920
      %v935 = vpack.c.b16 %v923, %v922
      %v936 = vpack.c.b16 %v925, %v924
      %v937 = vpack.c.b16 %v927, %v926
      %v938 = vpack.c.b16 %v929, %v928
      %v939 = vpack.c.b16 %v931, %v930
      %948 = vmatprep.subr.bf16.mxu0 0
      %949 = vmatpush1.bf16.msra.mxu0 %v939
      %950 = vmatprep.subr.bf16.mxu0 0
      %951 = vmatpush1.bf16.msra.mxu0 %v938
      %952 = vmatprep.subr.bf16.mxu0 0
      %953 = vmatpush1.bf16.msra.mxu0 %v937
      %954 = vmatprep.subr.bf16.mxu0 0
      %955 = vmatpush1.bf16.msra.mxu0 %v936
      %956 = vmatprep.subr.bf16.mxu0 0
      %957 = vmatpush1.bf16.msra.mxu0 %v935
      %958 = vmatprep.subr.bf16.mxu0 0
      %959 = vmatpush1.bf16.msra.mxu0 %v934
      %960 = vmatprep.subr.bf16.mxu0 0
      %961 = vmatpush1.bf16.msra.mxu0 %v933
      %962 = vmatprep.subr.bf16.mxu0 0
      %963 = vmatpush1.bf16.msra.mxu0 %v932
      %964 = vmatprep.subr.bf16.mxu0 0
      %965 = vmatpush2.bf16.msra.mxu0 0
      %966 = vmatprep.subr.bf16.mxu0 0
      %967 = vmatpush2.bf16.msra.mxu0 0
      %968 = vmatprep.subr.bf16.mxu0 0
      %969 = vmatpush2.bf16.msra.mxu0 0
      %970 = vmatprep.subr.bf16.mxu0 0
      %971 = vmatpush2.bf16.msra.mxu0 0
      %972 = vmatprep.subr.bf16.mxu0 0
      %973 = vmatpush2.bf16.msra.mxu0 0
      %974 = vmatprep.subr.bf16.mxu0 0
      %975 = vmatpush2.bf16.msra.mxu0 0
      %976 = vmatprep.subr.bf16.mxu0 0
      %977 = vmatpush2.bf16.msra.mxu0 0
      %978 = vmatprep.subr.bf16.mxu0 0
      %979 = vmatpush2.bf16.msra.mxu0 0
      %980 = vmatprep.mubr.bf16.mxu0 0
      %981 = vmatmul.mubr.bf16.gmra.mxu0 %v873
      %v982 = vpop.f32.mrf.mxu0
      %v983 = vadd.f32 %v898, %v982
      %v984 = vpop.f32.mrf.mxu0
      %v985 = vpop.f32.mrf.mxu0
      %v986 = vadd.f32 %v898, %v985
      %v987 = vpop.f32.mrf.mxu0
      %988 = vmatprep.mubr.bf16.mxu0 0
      %989 = vmatmul.mubr.bf16.gmra.mxu0 %v874
      %v990 = vpop.f32.mrf.mxu0
      %v991 = vadd.f32 %v898, %v990
      %v992 = vpop.f32.mrf.mxu0
      %v993 = vpop.f32.mrf.mxu0
      %v994 = vadd.f32 %v898, %v993
      %v995 = vpop.f32.mrf.mxu0
      %996 = vdwg.mxu0
      %v997 = vxor.u32 %v983, 2147483648
      %v998 = vxor.u32 %v986, 2147483648
      %v999 = vxor.u32 %v991, 2147483648
      %v1000 = vxor.u32 %v994, 2147483648
      %v1001 = vmul.f32 %v997, 1.442695
      %v1002 = vpow.pop %v1001
      %v1003 = vmul.f32 %v998, 1.442695
      %v1004 = vpow.pop %v1003
      %v1005 = vmul.f32 %v999, 1.442695
      %v1006 = vpow.pop %v1005
      %v1007 = vmul.f32 %v1000, 1.442695
      %v1008 = vpow.pop %v1007
      %v1009 = vadd.f32 %v1002, 1.0
      %v1010 = vadd.f32 %v1004, 1.0
      %v1011 = vadd.f32 %v1006, 1.0
      %v1012 = vadd.f32 %v1008, 1.0
      %v1013 = vrcp.pop %v1009
      %v1014 = vmul.f32 1.0, %v1013
      %v1015 = vrcp.pop %v1010
      %v1016 = vmul.f32 1.0, %v1015
      %v1017 = vrcp.pop %v1011
      %v1018 = vmul.f32 1.0, %v1017
      %v1019 = vrcp.pop %v1012
      %v1020 = vmul.f32 1.0, %v1019
      %v1021 = vmul.f32 %v983, %v1014
      %v1022 = vmul.f32 %v986, %v1016
      %v1023 = vmul.f32 %v991, %v1018
      %v1024 = vmul.f32 %v994, %v1020
      %v1025 = vpack.c.bf16 %v1022, %v1021
      %v1026 = vpack.c.bf16 %v1024, %v1023
      %s1027 = scalar_lea.vmem %s3, 128
      %v1028 = vld [vmem:[%s1027] sm:$0xf]
      %v1029 = vld [vmem:[%s1027 + $0x4] sm:$0xf]
      %v1030 = vld [vmem:[%s1027 + $0x8] sm:$0xf]
      %v1031 = vld [vmem:[%s1027 + $0xc] sm:$0xf]
      %v1032 = vld [vmem:[%s1027 + $0x10] sm:$0xf]
      %v1033 = vld [vmem:[%s1027 + $0x14] sm:$0xf]
      %v1034 = vld [vmem:[%s1027 + $0x18] sm:$0xf]
      %v1035 = vld [vmem:[%s1027 + $0x1c] sm:$0xf]
      %v1036 = vld [vmem:[%s1027 + $0x20] sm:$0xf]
      %v1037 = vld [vmem:[%s1027 + $0x24] sm:$0xf]
      %v1038 = vld [vmem:[%s1027 + $0x28] sm:$0xf]
      %v1039 = vld [vmem:[%s1027 + $0x2c] sm:$0xf]
      %v1040 = vld [vmem:[%s1027 + $0x30] sm:$0xf]
      %v1041 = vld [vmem:[%s1027 + $0x34] sm:$0xf]
      %v1042 = vld [vmem:[%s1027 + $0x38] sm:$0xf]
      %v1043 = vld [vmem:[%s1027 + $0x3c] sm:$0xf]
      %s1044 = scalar_lea.vmem %s4, 2
      %v1045 = vld [vmem:[%s1044] sm:$0x1]
      %v1047 = vlaneseq
      %v1048 = vshrl.u32 %v1047, 7
      %v1049 = vsub.s32 0, %v1048
      %v1050 = vrot.slane %v1045, %v1049
      %v1068 = vunpack.c.l.b16 %v1028
      %v1069 = vunpack.c.l.b16 %v1029
      %v1070 = vunpack.c.l.b16 %v1030
      %v1071 = vunpack.c.l.b16 %v1031
      %v1072 = vunpack.c.l.b16 %v1032
      %v1073 = vunpack.c.l.b16 %v1033
      %v1074 = vunpack.c.l.b16 %v1034
      %v1075 = vunpack.c.l.b16 %v1035
      %v1076 = vunpack.c.l.b16 %v1036
      %v1077 = vunpack.c.l.b16 %v1037
      %v1078 = vunpack.c.l.b16 %v1038
      %v1079 = vunpack.c.l.b16 %v1039
      %v1080 = vunpack.c.l.b16 %v1040
      %v1081 = vunpack.c.l.b16 %v1041
      %v1082 = vunpack.c.l.b16 %v1042
      %v1083 = vunpack.c.l.b16 %v1043
      %v1084 = vpack.c.b16 %v1069, %v1068
      %v1085 = vpack.c.b16 %v1071, %v1070
      %v1086 = vpack.c.b16 %v1073, %v1072
      %v1087 = vpack.c.b16 %v1075, %v1074
      %v1088 = vpack.c.b16 %v1077, %v1076
      %v1089 = vpack.c.b16 %v1079, %v1078
      %v1090 = vpack.c.b16 %v1081, %v1080
      %v1091 = vpack.c.b16 %v1083, %v1082
      %1100 = vmatprep.subr.bf16.mxu0 0
      %1101 = vmatpush1.bf16.msra.mxu0 %v1091
      %1102 = vmatprep.subr.bf16.mxu0 0
      %1103 = vmatpush1.bf16.msra.mxu0 %v1090
      %1104 = vmatprep.subr.bf16.mxu0 0
      %1105 = vmatpush1.bf16.msra.mxu0 %v1089
      %1106 = vmatprep.subr.bf16.mxu0 0
      %1107 = vmatpush1.bf16.msra.mxu0 %v1088
      %1108 = vmatprep.subr.bf16.mxu0 0
      %1109 = vmatpush1.bf16.msra.mxu0 %v1087
      %1110 = vmatprep.subr.bf16.mxu0 0
      %1111 = vmatpush1.bf16.msra.mxu0 %v1086
      %1112 = vmatprep.subr.bf16.mxu0 0
      %1113 = vmatpush1.bf16.msra.mxu0 %v1085
      %1114 = vmatprep.subr.bf16.mxu0 0
      %1115 = vmatpush1.bf16.msra.mxu0 %v1084
      %1116 = vmatprep.subr.bf16.mxu0 0
      %1117 = vmatpush2.bf16.msra.mxu0 0
      %1118 = vmatprep.subr.bf16.mxu0 0
      %1119 = vmatpush2.bf16.msra.mxu0 0
      %1120 = vmatprep.subr.bf16.mxu0 0
      %1121 = vmatpush2.bf16.msra.mxu0 0
      %1122 = vmatprep.subr.bf16.mxu0 0
      %1123 = vmatpush2.bf16.msra.mxu0 0
      %1124 = vmatprep.subr.bf16.mxu0 0
      %1125 = vmatpush2.bf16.msra.mxu0 0
      %1126 = vmatprep.subr.bf16.mxu0 0
      %1127 = vmatpush2.bf16.msra.mxu0 0
      %1128 = vmatprep.subr.bf16.mxu0 0
      %1129 = vmatpush2.bf16.msra.mxu0 0
      %1130 = vmatprep.subr.bf16.mxu0 0
      %1131 = vmatpush2.bf16.msra.mxu0 0
      %1132 = vmatprep.mubr.bf16.mxu0 0
      %1133 = vmatmul.mubr.bf16.gmra.mxu0 %v1025
      %v1134 = vpop.f32.mrf.mxu0
      %v1135 = vadd.f32 %v1050, %v1134
      %v1136 = vpop.f32.mrf.mxu0
      %v1137 = vpop.f32.mrf.mxu0
      %v1138 = vadd.f32 %v1050, %v1137
      %v1139 = vpop.f32.mrf.mxu0
      %1140 = vmatprep.mubr.bf16.mxu0 0
      %1141 = vmatmul.mubr.bf16.gmra.mxu0 %v1026
      %v1142 = vpop.f32.mrf.mxu0
      %v1143 = vadd.f32 %v1050, %v1142
      %v1144 = vpop.f32.mrf.mxu0
      %v1145 = vpop.f32.mrf.mxu0
      %v1146 = vadd.f32 %v1050, %v1145
      %v1147 = vpop.f32.mrf.mxu0
      %1148 = vdwg.mxu0
      %v1149 = vadd.f32 %v841, %v1135
      %v1150 = vadd.f32 %v842, %v1138
      %v1151 = vadd.f32 %v843, %v1143
      %v1152 = vadd.f32 %v844, %v1146
      %1153 = vst [vmem:[%s226] sm:$0xff] %v1149
      %1154 = vst [vmem:[%s226 + $0x8] sm:$0xff] %v1150
      %1155 = vst [vmem:[%s226 + $0x10] sm:$0xff] %v1151
      %1156 = vst [vmem:[%s226 + $0x18] sm:$0xff] %v1152
      %s1157 = smul.u32 4, %s16
      %p1158 = scmp.lt.s32.totalorder %s1157, 7
      %s1159 = scalar_select %p1158, %s1157, 7
      %s1160 = smul.addr %s1159, 8
      %s1161 = scalar_lea.vmem %s5, %s1160
      // Predicated region
      $region41: #{residual_stack.1} parent=39 // pred_check
        %p1162 = pneg %p144
      $region42: #{residual_stack.1} parent=39 // pred_check_branch
        %1164 = sbr.rel (%p1162) target = $region44
      $region43: #{residual_stack.1} parent=39 // pred_region
        %s1165 = smul.u32 4, %s16
      $region44: #{residual_stack.1} parent=39 // pred_fallthru
        _
    $region40: #{residual_stack.1} parent=5 // pred_fallthru
      _
    %p1166 = scmp.le.s32.totalorder 2, %s11
    // Predicated region
    $region45: #{residual_stack.1} parent=5 // pred_check
      %p1167 = pneg %p1166
    $region46: #{residual_stack.1} parent=5 // pred_check_branch
      %1169 = sbr.rel (%p1167) target = $region48
    $region47: #{residual_stack.1} parent=5 // pred_region
      %s1170 = ssub.s32 %s11, 2
      // Predicated region
      $region49: #{residual_stack.1} parent=47 // pred_check
        %p1171 = pneg %p150
      $region50: #{residual_stack.1} parent=47 // pred_check_branch
        %1173 = sbr.rel (%p1171) target = $region52
      $region51: #{residual_stack.1} parent=47 // pred_region
        %s1174 = smul.u32 4, %s17
        %p1175 = scmp.lt.s32.totalorder %s1174, 7
        %s1176 = scalar_select %p1175, %s1174, 7
        %s1177 = smul.addr %s1176, 8
        %s1178 = scalar_lea.vmem %s5, %s1177
      $region52: #{residual_stack.1} parent=47 // pred_fallthru
        _
    $region48: #{residual_stack.1} parent=5 // pred_fallthru
      _
  $region6: #{residual_stack.1} parent=0 // loop_footer
    %s15 = sadd.s32 1, %s11
  $region7: #{residual_stack.1} parent=0 // loop_footer_branch
    %10 = sbr.rel target = $region3
  $region8: #{residual_stack.1} parent=0 // loop_exit
    _

</llo_original>
